<compile_context>
chip_gen: v7x
topology: tpu7x:2x2x1
jax: 0.10.0
libtpu: 0.0.40
codegen_flags: <defaults>
</compile_context>

<pallas_src>
from functools import partial

import jax
import jax.numpy as jnp
from jax.experimental import pallas as pl
from jax.experimental.pallas import tpu as pltpu


# ------------------------- Pallas kernel -------------------------

def _range_loss_kernel(x_ref, o_ref, acc_ref, *, min_value, max_value, inv_n):
    """One grid step processes a (tile_rows, 128) block of the flattened input.

    acc_ref: (1, 128) f32 VMEM scratch holding per-lane partial sums
             (persists across grid steps).
    o_ref:   (1, 1) f32 output, written only at the last step.
    """
    step = pl.program_id(0)

    @pl.when(step == 0)
    def _init():
        acc_ref[...] = jnp.zeros_like(acc_ref)

    x = x_ref[...]
    # relu(min - x) + relu(x - max)  (pure VPU work; kernel is HBM-bound)
    penalty = jnp.maximum(min_value - x, 0.0) + jnp.maximum(x - max_value, 0.0)
    # sublane reduction -> (1, 128) lane partials, accumulated across the grid
    acc_ref[...] += jnp.sum(penalty, axis=0, keepdims=True)

    @pl.when(step == pl.num_programs(0) - 1)
    def _finalize():
        # single cross-lane reduce + single division by the true element count
        o_ref[...] = jnp.sum(acc_ref[...], axis=1, keepdims=True) * inv_n


# ------------------------- wrapper -------------------------

def range_loss(inputs, min_value=0.0, max_value=1.0, invalidity_margins=None,
               max_tile_rows=512):
    """Forward pass of RangeLoss."""
    x = inputs
    if invalidity_margins:
        # TODO(synk): shave_edge definition not provided; assumed symmetric spatial crop.
        m = int(invalidity_margins)
        x = x[..., m:-m, m:-m]

    n = int(x.size)
    xf = x.reshape(-1).astype(jnp.float32)

    LANES, SUB = 128, 8
    rows = -(-n // LANES)                    # ceil(n / 128)
    rows = -(-rows // SUB) * SUB             # round up to multiple of 8 sublanes
    tile_rows = min(max_tile_rows, rows)
    tile_rows = max(SUB, (tile_rows // SUB) * SUB)
    rows_padded = -(-rows // tile_rows) * tile_rows
    total = rows_padded * LANES

    # Pad with an in-range value -> zero penalty contribution from padding.
    pad_val = 0.5 * (float(min_value) + float(max_value))
    xf = jnp.pad(xf, (0, total - n), constant_values=pad_val)
    x2d = xf.reshape(rows_padded, LANES)

    grid = (rows_padded // tile_rows,)
    out = pl.pallas_call(
        partial(_range_loss_kernel,
                min_value=float(min_value),
                max_value=float(max_value),
                inv_n=1.0 / float(n)),
        out_shape=jax.ShapeDtypeStruct((1, 1), jnp.float32),
        grid=grid,
        in_specs=[pl.BlockSpec((tile_rows, LANES), lambda i: (i, 0))],
        out_specs=pl.BlockSpec((1, 1), lambda i: (0, 0)),
        scratch_shapes=[pltpu.VMEM((1, LANES), jnp.float32)],
        compiler_params=pltpu.CompilerParams(
            dimension_semantics=("arbitrary",)),   # grid axis is a reduction
    )(x2d)
    return out[0, 0]


# ------------------------- main -------------------------

if __name__ == "__main__":
    key = jax.random.PRNGKey(0)
    k1, k2 = jax.random.split(key)

    # Small input with values outside [0, 1] so the loss is non-trivial.
    x = jax.random.uniform(k1, (2, 4, 16, 16), dtype=jnp.float32,
                           minval=-0.5, maxval=1.5)
    loss = jax.jit(lambda a: range_loss(a, 0.0, 1.0, None))(x)
    jax.block_until_ready(loss)
    ref = jnp.mean(jnp.maximum(0.0 - x, 0.0) + jnp.maximum(x - 1.0, 0.0))
    assert loss.shape == () and bool(jnp.isfinite(loss))
    assert jnp.allclose(loss, ref, rtol=1e-5, atol=1e-6), (loss, ref)

    # Larger input: exercises the multi-step (pipelined) grid and the
    # invalidity_margins (shave) path.
    y = jax.random.uniform(k2, (4, 8, 64, 64), dtype=jnp.float32,
                           minval=-0.25, maxval=1.25)
    loss2 = jax.jit(lambda a: range_loss(a, 0.0, 1.0, invalidity_margins=2))(y)
    jax.block_until_ready(loss2)
    ys = y[..., 2:-2, 2:-2]
    ref2 = jnp.mean(jnp.maximum(0.0 - ys, 0.0) + jnp.maximum(ys - 1.0, 0.0))
    assert bool(jnp.isfinite(loss2))
    assert jnp.allclose(loss2, ref2, rtol=1e-5, atol=1e-6), (loss2, ref2)

    print("KERNEL_OK")
</pallas_src>

<mosaic_0001>
module attributes {stable_mosaic.version = 11 : i64} {
  func.func @_range_loss_kernel(%arg0: i32, %arg1: memref<16x128xf32, #tpu.memory_space<vmem>>, %arg2: memref<1x1xf32, #tpu.memory_space<vmem>>, %arg3: memref<1x128xf32, #tpu.memory_space<vmem>>) attributes {dimension_semantics = [#tpu.dimension_semantics<arbitrary>], iteration_bounds = array<i64: 1>, scalar_prefetch = 0 : i64, scratch_operands = 1 : i64, tpu.core_type = #tpu.core_type<tc>, window_params = [{transform_indices = @transform_0, window_bounds = array<i64: 16, 128>}, {pipeline_mode = #tpu.pipeline_mode<synchronous>, transform_indices = @transform_1, window_bounds = array<i64: 1, 1>}]} {
    %c0_i32 = arith.constant 0 : i32
    %0 = arith.cmpi eq, %arg0, %c0_i32 : i32
    %1 = arith.extui %0 : i1 to i32
    %c0_i32_0 = arith.constant 0 : i32
    %2 = arith.cmpi ne, %1, %c0_i32_0 : i32
    scf.if %2 {
      %cst_12 = arith.constant 0.000000e+00 : f32
      %21 = vector.broadcast %cst_12 : f32 to vector<1x128xf32>
      %c0_13 = arith.constant 0 : index
      %c0_14 = arith.constant 0 : index
      %22 = vector.load %arg3[%c0_13, %c0_14] : memref<1x128xf32, #tpu.memory_space<vmem>>, vector<1x128xf32>
      tpu.vector_store %arg3[%c0_13, %c0_14], %21 {strides = array<i32>} : memref<1x128xf32, #tpu.memory_space<vmem>>, vector<1x128xf32>,
    } else {
    }
    %c0 = arith.constant 0 : index
    %c0_1 = arith.constant 0 : index
    %3 = vector.load %arg1[%c0, %c0_1] : memref<16x128xf32, #tpu.memory_space<vmem>>, vector<16x128xf32>
    %cst = arith.constant 0.000000e+00 : f32
    %4 = vector.broadcast %cst : f32 to vector<16x128xf32>
    %5 = arith.subf %4, %3 : vector<16x128xf32>
    %cst_2 = arith.constant 0.000000e+00 : f32
    %6 = vector.broadcast %cst_2 : f32 to vector<16x128xf32>
    %7 = arith.maximumf %5, %6 : vector<16x128xf32>
    %cst_3 = arith.constant 1.000000e+00 : f32
    %8 = vector.broadcast %cst_3 : f32 to vector<16x128xf32>
    %9 = arith.subf %3, %8 : vector<16x128xf32>
    %cst_4 = arith.constant 0.000000e+00 : f32
    %10 = vector.broadcast %cst_4 : f32 to vector<16x128xf32>
    %11 = arith.maximumf %9, %10 : vector<16x128xf32>
    %12 = arith.addf %7, %11 : vector<16x128xf32>
    %c0_5 = arith.constant 0 : index
    %c0_6 = arith.constant 0 : index
    %13 = vector.load %arg3[%c0_5, %c0_6] : memref<1x128xf32, #tpu.memory_space<vmem>>, vector<1x128xf32>
    %cst_7 = arith.constant dense<0.000000e+00> : vector<128xf32>
    %14 = vector.multi_reduction <add>, %12, %cst_7 [0] : vector<16x128xf32> to vector<128xf32>
    %15 = vector.shape_cast %14 : vector<128xf32> to vector<1x128xf32>
    %16 = arith.addf %13, %15 : vector<1x128xf32>
    %c0_8 = arith.constant 0 : index
    %c0_9 = arith.constant 0 : index
    %17 = vector.load %arg3[%c0_8, %c0_9] : memref<1x128xf32, #tpu.memory_space<vmem>>, vector<1x128xf32>
    tpu.vector_store %arg3[%c0_8, %c0_9], %16 {strides = array<i32>} : memref<1x128xf32, #tpu.memory_space<vmem>>, vector<1x128xf32>,
    %c0_i32_10 = arith.constant 0 : i32
    %18 = arith.cmpi eq, %arg0, %c0_i32_10 : i32
    %19 = arith.extui %18 : i1 to i32
    %c0_i32_11 = arith.constant 0 : i32
    %20 = arith.cmpi ne, %19, %c0_i32_11 : i32
    scf.if %20 {
      %c0_12 = arith.constant 0 : index
      %c0_13 = arith.constant 0 : index
      %21 = vector.load %arg3[%c0_12, %c0_13] : memref<1x128xf32, #tpu.memory_space<vmem>>, vector<1x128xf32>
      %cst_14 = arith.constant dense<0.000000e+00> : vector<1xf32>
      %22 = vector.multi_reduction <add>, %21, %cst_14 [1] : vector<1x128xf32> to vector<1xf32>
      %23 = vector.shape_cast %22 : vector<1xf32> to vector<1x1xf32>
      %cst_15 = arith.constant 4.8828125E-4 : f32
      %24 = vector.broadcast %cst_15 : f32 to vector<1x1xf32>
      %25 = arith.mulf %23, %24 : vector<1x1xf32>
      %c0_16 = arith.constant 0 : index
      %c0_17 = arith.constant 0 : index
      %26 = vector.load %arg2[%c0_16, %c0_17] : memref<1x1xf32, #tpu.memory_space<vmem>>, vector<1x1xf32>
      tpu.vector_store %arg2[%c0_16, %c0_17], %25 {strides = array<i32>} : memref<1x1xf32, #tpu.memory_space<vmem>>, vector<1x1xf32>,
    } else {
    }
    return
  }
  func.func @transform_0(%arg0: i32) -> (i32, i32) {
    %c0_i32 = arith.constant 0 : i32
    %c0_i32_0 = arith.constant 0 : i32
    return %arg0, %c0_i32 : i32, i32
  }
  func.func @transform_1(%arg0: i32) -> (i32, i32) {
    %c0_i32 = arith.constant 0 : i32
    %c0_i32_0 = arith.constant 0 : i32
    %c0_i32_1 = arith.constant 0 : i32
    return %c0_i32, %c0_i32_0 : i32, i32
  }
}

</mosaic_0001>

<llo_original>
// kernel: _lambda_.1
$region0: #{_lambda_.1}
  #allocation0 [shape = 'u32[]', space=smem, size = 0x4, offset = 0x4, fixed_abs, tag = 'smem constant byte address 0x4 - core index']
  #allocation1 [shape = 'u32[144,128]{1,0:T(1,128)}', space=vmem, size = 0x12000, scoped, tag = 'internal scratch']
  #allocation2 [shape = 'f32[1,128]{1,0:T(1,128)}', space=vmem, size = 0x200, scoped, tag = 'scratch operand']
  %s0 = inlined_call_operand.vmem [shape: f32[16,128], index: 0, kind: input, shape index: {}]
  %s1 = inlined_call_operand.hbm [shape: f32[1,1], index: 1, kind: output, shape index: {}]
  %s2 = sld [smem:[#allocation0]]
  $region22: #{_lambda_.1} parent=0
    _
  %s4 = ssub.s32 1, %s2
  %s5 = scalar_select 0, %s4, %s2
  $region1: #{_lambda_.1} parent=0
    #allocation3 [shape = 'u8[512]{0}', space=vmem, size = 0x400, scoped, tag = 'output window, operand 0, single buffered']
    #allocation4 [shape = 's32[1]{0}', space=sflag, size = 0x4, scoped, tag = 'scoped memory for _lambda_.1']
    %6 = vsyncpa [#allocation4], 0
    // Predicated region
    $region2: #{_lambda_.1} parent=1 // pred_check
      _
    $region3: #{_lambda_.1} parent=1 // pred_check_branch
      %8 = sbr.rel (0) target = $region5
    $region4: #{_lambda_.1} parent=1 // pred_region
      _
    $region5: #{_lambda_.1} parent=1 // pred_fallthru
      _
    %p9 = scmp.eq.s32.totalorder 0, 0
    // Predicated region
    $region6: #{_lambda_.1} parent=1 // pred_check
      %p10 = pneg %p9
    $region7: #{_lambda_.1} parent=1 // pred_check_branch
      %12 = sbr.rel (%p10) target = $region9
    $region8: #{_lambda_.1} parent=1 // pred_region
      %13 = vst [vmem:[#allocation2] sm:$0x1] 0.0
    $region9: #{_lambda_.1} parent=1 // pred_fallthru
      _
    %v14 = vld [vmem:[%s0] sm:$0xff]
    %v15 = vld [vmem:[%s0 + $0x8] sm:$0xff]
    %v16 = vsub.f32 0.0, %v14
    %v17 = vsub.f32 0.0, %v15
    %v18 = vmax.f32 %v16, 0.0
    %v19 = vmax.f32 %v17, 0.0
    %v20 = vsub.f32 %v14, 1.0
    %v21 = vsub.f32 %v15, 1.0
    %v22 = vmax.f32 %v20, 0.0
    %v23 = vmax.f32 %v21, 0.0
    %v24 = vadd.f32 %v18, %v22
    %v25 = vadd.f32 %v19, %v23
    %v26 = vld [vmem:[#allocation2] sm:$0x1]
    %v27 = vadd.f32 %v24, %v25
    %v28 = vrot.slane %v27, 4
    %v29 = vadd.f32 %v27, %v28
    %v30 = vrot.slane %v29, 2
    %v31 = vadd.f32 %v29, %v30
    %v32 = vrot.slane %v31, 1
    %v33 = vadd.f32 %v31, %v32
    %v34 = vadd.f32 %v26, %v33
    %35 = vst [vmem:[#allocation2] sm:$0x1] %v34
    // Predicated region
    $region10: #{_lambda_.1} parent=1 // pred_check
      %p36 = pneg %p9
    $region11: #{_lambda_.1} parent=1 // pred_check_branch
      %38 = sbr.rel (%p36) target = $region13
    $region12: #{_lambda_.1} parent=1 // pred_region
      %v39 = vld [vmem:[#allocation2] sm:$0x1]
      %vm40 = vcmask 1040384
      %v41 = vsel %vm40, %v39, 0.0
      %42 = vadd.xlane.f32.xlu0 %v41
      %v43 = vpop.xlane.xlu0 %42
      %v44 = vmul.f32 %v43, 0.00048828125
      %vm45 = vcmask 0
      %46 = vst.msk [vmem:[#allocation3] sm:$0x1] %vm45, %v44
    $region13: #{_lambda_.1} parent=1 // pred_fallthru
      _
    // Predicated region
    $region14: #{_lambda_.1} parent=1 // pred_check
      _
    $region15: #{_lambda_.1} parent=1 // pred_check_branch
      %48 = sbr.rel (0) target = $region17
    $region16: #{_lambda_.1} parent=1 // pred_region
      %s50 = ssub.s32 16, 16
      %51 = vsyncadd [#allocation4], %s50
      %s53 = sshll.u32 [#allocation3], 4
      %s54 = int_to_ptr.vmem [resolvable:$true] %s53
      %56 = dma.vmem_to_hbm [thread:$0]  %s54, 16, %s1, [#allocation4]
    $region17: #{_lambda_.1} parent=1 // pred_fallthru
      _
    // Predicated region
    $region18: #{_lambda_.1} parent=1 // pred_check
      _
    $region19: #{_lambda_.1} parent=1 // pred_check_branch
      %58 = sbr.rel (0) target = $region21
    $region20: #{_lambda_.1} parent=1 // pred_region
      %59 = dma.done [#allocation4], 16
    $region21: #{_lambda_.1} parent=1 // pred_fallthru
      _
    %60 = vsyncpa [#allocation4], 1

</llo_original>
